<compile_context>
chip_gen: v7x
topology: tpu7x:2x2x1
jax: 0.10.0
libtpu: 0.0.40
codegen_flags: <defaults>
</compile_context>

<pallas_src>
import jax
import jax.numpy as jnp
from jax.experimental import pallas as pl
from jax.experimental.pallas import tpu as pltpu


def mlp_kernel(x_ref,
               we_ref, be_ref,
               w1_ref, b1_ref,
               w2_ref, b2_ref,
               wo_ref, bo_ref,
               o_ref):
    """Fused 4-layer MLP: relu(xWe+be) -> relu(.W1+b1) -> relu(.W2+b2) -> .Wo+bo.

    Matmul operands are bf16 (MXU-native); accumulation, bias add and ReLU are
    float32.
    """
    x = x_ref[...]                                              # bf16 [tb, D_in]

    h = jnp.dot(x, we_ref[...], preferred_element_type=jnp.float32) + be_ref[...]
    h = jnp.maximum(h, 0.0).astype(jnp.bfloat16)                # relu(embedding(x))

    h = jnp.dot(h, w1_ref[...], preferred_element_type=jnp.float32) + b1_ref[...]
    h = jnp.maximum(h, 0.0).astype(jnp.bfloat16)                # relu(fc1)

    h = jnp.dot(h, w2_ref[...], preferred_element_type=jnp.float32) + b2_ref[...]
    h = jnp.maximum(h, 0.0).astype(jnp.bfloat16)                # relu(fc2)

    o = jnp.dot(h, wo_ref[...], preferred_element_type=jnp.float32) + bo_ref[...]
    # TODO(synk): if a store tail shows up in profiles, emit a lane-dense (tb,)
    # output instead of the masked (tb, 1) column store; bytes are tiny here.
    o_ref[...] = o.astype(o_ref.dtype)                          # out (no activation)


def _pick_batch_tile(batch):
    """~512-row tiles, >=2 grid steps when the batch allows it, multiple of 16."""
    if batch >= 1024:
        return 512
    if batch >= 32:
        return max(16, ((batch // 2) // 16) * 16)    # ~B/2 -> at least 2 steps
    return 16                                        # tiny batch: one padded tile


def net_with_embedding(x, params, *, batch_tile=None):
    """x: [B, D_in] float32.  params: dict of (weight [in,out], bias [1,out]) f32."""
    B, D_in = x.shape
    we, be = params["embedding"]
    w1, b1 = params["fc1"]
    w2, b2 = params["fc2"]
    wo, bo = params["out"]
    D_emb = we.shape[1]
    H1 = w1.shape[1]
    H2 = w2.shape[1]

    tb = batch_tile if batch_tile is not None else _pick_batch_tile(B)
    n_steps = pl.cdiv(B, tb)
    Bp = n_steps * tb
    if Bp != B:                                   # pad so the batch grid tiles evenly
        x = jnp.pad(x, ((0, Bp - B), (0, 0)))

    # bf16 operands for the MXU and halved HBM bytes on the streamed x; biases
    # stay f32 and are added to the f32 MXU accumulator inside the kernel.
    xb = x.astype(jnp.bfloat16)
    web, w1b, w2b, wob = (w.astype(jnp.bfloat16) for w in (we, w1, w2, wo))

    # Weights / biases are small and constant over the grid: keep them fully
    # VMEM-resident and single-buffered (fetched once, never re-DMAed). Only
    # the activation tile of x streams along the (parallel) batch grid.
    def const_spec(shape):
        return pl.BlockSpec(shape, lambda i: (0, 0), pipeline_mode=pl.Buffered(1))

    flops = 2 * Bp * (D_in * D_emb + D_emb * H1 + H1 * H2 + H2 * 1)
    bytes_accessed = (
        xb.size * 2                                              # streamed input (bf16)
        + sum(w.size * 2 for w in (web, w1b, w2b, wob))          # bf16 weights
        + sum(b.size * 4 for b in (be, b1, b2, bo))              # f32 biases
        + Bp * 1 * 4)                                            # f32 output

    out = pl.pallas_call(
        mlp_kernel,
        out_shape=jax.ShapeDtypeStruct((Bp, 1), jnp.float32),
        grid=(n_steps,),
        in_specs=[
            pl.BlockSpec((tb, D_in), lambda i: (i, 0)),          # x (streamed)
            const_spec((D_in, D_emb)), const_spec((1, D_emb)),   # embedding (vae.fc1)
            const_spec((D_emb, H1)),   const_spec((1, H1)),      # fc1
            const_spec((H1, H2)),      const_spec((1, H2)),      # fc2
            const_spec((H2, 1)),       const_spec((1, 1)),       # out
        ],
        out_specs=pl.BlockSpec((tb, 1), lambda i: (i, 0)),
        compiler_params=pltpu.CompilerParams(
            dimension_semantics=("parallel",)),
        cost_estimate=pl.CostEstimate(
            flops=flops, transcendentals=0, bytes_accessed=bytes_accessed),
    )(xb, web, be, w1b, b1, w2b, b2, wob, bo)

    return out[:B] if Bp != B else out


def init_params(key, d_in, d_emb, h1, h2):
    """Deterministic synthetic init (PyTorch-Linear-like uniform fan-in scaling)."""
    def linear(k, fan_in, fan_out):
        kw, kb = jax.random.split(k)
        bound = 1.0 / jnp.sqrt(jnp.float32(fan_in))
        w = jax.random.uniform(kw, (fan_in, fan_out), jnp.float32, -bound, bound)
        b = jax.random.uniform(kb, (1, fan_out), jnp.float32, -bound, bound)
        return w, b

    k0, k1, k2, k3 = jax.random.split(key, 4)
    return {
        "embedding": linear(k0, d_in, d_emb),   # vae.fc1
        "fc1":       linear(k1, d_emb, h1),
        "fc2":       linear(k2, h1, h2),
        "out":       linear(k3, h2, 1),
    }


def reference_forward(x, params, *, matmul_dtype=jnp.float32):
    """Plain-JAX reference matching the PyTorch forward.

    matmul_dtype=bfloat16 mirrors the kernel's bf16-operand / f32-accumulate
    matmuls for a tight numerical comparison; float32 is the exact PyTorch path.
    """
    we, be = params["embedding"]
    w1, b1 = params["fc1"]
    w2, b2 = params["fc2"]
    wo, bo = params["out"]

    def lin(h, w, b):
        return jnp.dot(h.astype(matmul_dtype), w.astype(matmul_dtype),
                       preferred_element_type=jnp.float32) + b

    h = jax.nn.relu(lin(x, we, be))
    h = jax.nn.relu(lin(h, w1, b1))
    h = jax.nn.relu(lin(h, w2, b2))
    return lin(h, wo, bo)


if __name__ == "__main__":
    # Shapes implied by the module: x is [batch, in_features] for the embedding
    # Linear (vae.fc1); hidden_shape = (hidden1, hidden2).
    D_IN, D_EMB, H1, H2 = 32, 64, 32, 16

    key = jax.random.PRNGKey(0)
    kx, kp = jax.random.split(key)
    params = init_params(kp, D_IN, D_EMB, H1, H2)

    # B=256 exercises the multi-step (2-tile) pipelined/parallel path;
    # B=50 exercises the non-divisible-batch pad+slice path.
    for B in (256, 50):
        x = jax.random.normal(jax.random.fold_in(kx, B), (B, D_IN), jnp.float32)

        y = jax.block_until_ready(net_with_embedding(x, params))
        assert y.shape == (B, 1), y.shape

        # Tight check against a reference using the same bf16-operand matmuls.
        y_bf = reference_forward(x, params, matmul_dtype=jnp.bfloat16)
        err_bf = jnp.max(jnp.abs(y - y_bf))
        assert jnp.allclose(y, y_bf, atol=5e-3, rtol=5e-3), f"bf16 ref err {err_bf}"

        # Loose semantic check against the exact float32 PyTorch-equivalent path.
        y_f32 = reference_forward(x, params, matmul_dtype=jnp.float32)
        err_f32 = jnp.max(jnp.abs(y - y_f32))
        assert jnp.allclose(y, y_f32, atol=5e-2, rtol=5e-2), f"f32 ref err {err_f32}"

    print("KERNEL_OK")
</pallas_src>

<mosaic_0001>
module attributes {stable_mosaic.version = 11 : i64} {
  func.func @mlp_kernel(%arg0: i32, %arg1: memref<128x32xbf16, #tpu.memory_space<vmem>>, %arg2: memref<32x64xbf16, #tpu.memory_space<vmem>>, %arg3: memref<1x64xf32, #tpu.memory_space<vmem>>, %arg4: memref<64x32xbf16, #tpu.memory_space<vmem>>, %arg5: memref<1x32xf32, #tpu.memory_space<vmem>>, %arg6: memref<32x16xbf16, #tpu.memory_space<vmem>>, %arg7: memref<1x16xf32, #tpu.memory_space<vmem>>, %arg8: memref<16x1xbf16, #tpu.memory_space<vmem>>, %arg9: memref<1x1xf32, #tpu.memory_space<vmem>>, %arg10: memref<128x1xf32, #tpu.memory_space<vmem>>) attributes {dimension_semantics = [#tpu.dimension_semantics<parallel>], iteration_bounds = array<i64: 2>, scalar_prefetch = 0 : i64, scratch_operands = 0 : i64, tpu.core_type = #tpu.core_type<tc>, window_params = [{transform_indices = @transform_0, window_bounds = array<i64: 128, 32>}, {pipeline_mode = #tpu.pipeline_mode<synchronous>, transform_indices = @transform_1, window_bounds = array<i64: 32, 64>}, {pipeline_mode = #tpu.pipeline_mode<synchronous>, transform_indices = @transform_2, window_bounds = array<i64: 1, 64>}, {pipeline_mode = #tpu.pipeline_mode<synchronous>, transform_indices = @transform_3, window_bounds = array<i64: 64, 32>}, {pipeline_mode = #tpu.pipeline_mode<synchronous>, transform_indices = @transform_4, window_bounds = array<i64: 1, 32>}, {pipeline_mode = #tpu.pipeline_mode<synchronous>, transform_indices = @transform_5, window_bounds = array<i64: 32, 16>}, {pipeline_mode = #tpu.pipeline_mode<synchronous>, transform_indices = @transform_6, window_bounds = array<i64: 1, 16>}, {pipeline_mode = #tpu.pipeline_mode<synchronous>, transform_indices = @transform_7, window_bounds = array<i64: 16, 1>}, {pipeline_mode = #tpu.pipeline_mode<synchronous>, transform_indices = @transform_8, window_bounds = array<i64: 1, 1>}, {transform_indices = @transform_9, window_bounds = array<i64: 128, 1>}]} {
    %c0 = arith.constant 0 : index
    %c0_0 = arith.constant 0 : index
    %0 = vector.load %arg1[%c0, %c0_0] : memref<128x32xbf16, #tpu.memory_space<vmem>>, vector<128x32xbf16>
    %c0_1 = arith.constant 0 : index
    %c0_2 = arith.constant 0 : index
    %1 = vector.load %arg2[%c0_1, %c0_2] : memref<32x64xbf16, #tpu.memory_space<vmem>>, vector<32x64xbf16>
    %cst = arith.constant dense<0.000000e+00> : vector<128x64xf32>
    %2 = tpu.matmul %0, %1, %cst {dimension_numbers = #tpu.dot_dimension_numbers<[1], [0], [0], [1], [0, 0, 1, 1], [], []>} : vector<128x32xbf16>, vector<32x64xbf16>, vector<128x64xf32> -> vector<128x64xf32>
    %c0_3 = arith.constant 0 : index
    %c0_4 = arith.constant 0 : index
    %3 = vector.load %arg3[%c0_3, %c0_4] : memref<1x64xf32, #tpu.memory_space<vmem>>, vector<1x64xf32>
    %4 = vector.broadcast %3 : vector<1x64xf32> to vector<128x64xf32>
    %5 = arith.addf %2, %4 : vector<128x64xf32>
    %cst_5 = arith.constant 0.000000e+00 : f32
    %6 = vector.broadcast %cst_5 : f32 to vector<128x64xf32>
    %7 = arith.maximumf %5, %6 : vector<128x64xf32>
    %8 = arith.truncf %7 : vector<128x64xf32> to vector<128x64xbf16>
    %c0_6 = arith.constant 0 : index
    %c0_7 = arith.constant 0 : index
    %9 = vector.load %arg4[%c0_6, %c0_7] : memref<64x32xbf16, #tpu.memory_space<vmem>>, vector<64x32xbf16>
    %cst_8 = arith.constant dense<0.000000e+00> : vector<128x32xf32>
    %10 = tpu.matmul %8, %9, %cst_8 {dimension_numbers = #tpu.dot_dimension_numbers<[1], [0], [0], [1], [0, 0, 1, 1], [], []>} : vector<128x64xbf16>, vector<64x32xbf16>, vector<128x32xf32> -> vector<128x32xf32>
    %c0_9 = arith.constant 0 : index
    %c0_10 = arith.constant 0 : index
    %11 = vector.load %arg5[%c0_9, %c0_10] : memref<1x32xf32, #tpu.memory_space<vmem>>, vector<1x32xf32>
    %12 = vector.broadcast %11 : vector<1x32xf32> to vector<128x32xf32>
    %13 = arith.addf %10, %12 : vector<128x32xf32>
    %cst_11 = arith.constant 0.000000e+00 : f32
    %14 = vector.broadcast %cst_11 : f32 to vector<128x32xf32>
    %15 = arith.maximumf %13, %14 : vector<128x32xf32>
    %16 = arith.truncf %15 : vector<128x32xf32> to vector<128x32xbf16>
    %c0_12 = arith.constant 0 : index
    %c0_13 = arith.constant 0 : index
    %17 = vector.load %arg6[%c0_12, %c0_13] : memref<32x16xbf16, #tpu.memory_space<vmem>>, vector<32x16xbf16>
    %cst_14 = arith.constant dense<0.000000e+00> : vector<128x16xf32>
    %18 = tpu.matmul %16, %17, %cst_14 {dimension_numbers = #tpu.dot_dimension_numbers<[1], [0], [0], [1], [0, 0, 1, 1], [], []>} : vector<128x32xbf16>, vector<32x16xbf16>, vector<128x16xf32> -> vector<128x16xf32>
    %c0_15 = arith.constant 0 : index
    %c0_16 = arith.constant 0 : index
    %19 = vector.load %arg7[%c0_15, %c0_16] : memref<1x16xf32, #tpu.memory_space<vmem>>, vector<1x16xf32>
    %20 = vector.broadcast %19 : vector<1x16xf32> to vector<128x16xf32>
    %21 = arith.addf %18, %20 : vector<128x16xf32>
    %cst_17 = arith.constant 0.000000e+00 : f32
    %22 = vector.broadcast %cst_17 : f32 to vector<128x16xf32>
    %23 = arith.maximumf %21, %22 : vector<128x16xf32>
    %24 = arith.truncf %23 : vector<128x16xf32> to vector<128x16xbf16>
    %c0_18 = arith.constant 0 : index
    %c0_19 = arith.constant 0 : index
    %25 = vector.load %arg8[%c0_18, %c0_19] : memref<16x1xbf16, #tpu.memory_space<vmem>>, vector<16x1xbf16>
    %cst_20 = arith.constant dense<0.000000e+00> : vector<128x1xf32>
    %26 = tpu.matmul %24, %25, %cst_20 {dimension_numbers = #tpu.dot_dimension_numbers<[1], [0], [0], [1], [0, 0, 1, 1], [], []>} : vector<128x16xbf16>, vector<16x1xbf16>, vector<128x1xf32> -> vector<128x1xf32>
    %c0_21 = arith.constant 0 : index
    %c0_22 = arith.constant 0 : index
    %27 = vector.load %arg9[%c0_21, %c0_22] : memref<1x1xf32, #tpu.memory_space<vmem>>, vector<1x1xf32>
    %28 = vector.broadcast %27 : vector<1x1xf32> to vector<128x1xf32>
    %29 = arith.addf %26, %28 : vector<128x1xf32>
    %c0_23 = arith.constant 0 : index
    %c0_24 = arith.constant 0 : index
    %30 = vector.load %arg10[%c0_23, %c0_24] : memref<128x1xf32, #tpu.memory_space<vmem>>, vector<128x1xf32>
    tpu.vector_store %arg10[%c0_23, %c0_24], %29 {strides = array<i32>} : memref<128x1xf32, #tpu.memory_space<vmem>>, vector<128x1xf32>,
    return
  }
  func.func @transform_0(%arg0: i32) -> (i32, i32) {
    %c0_i32 = arith.constant 0 : i32
    %c0_i32_0 = arith.constant 0 : i32
    return %arg0, %c0_i32 : i32, i32
  }
  func.func @transform_1(%arg0: i32) -> (i32, i32) {
    %c0_i32 = arith.constant 0 : i32
    %c0_i32_0 = arith.constant 0 : i32
    %c0_i32_1 = arith.constant 0 : i32
    return %c0_i32, %c0_i32_0 : i32, i32
  }
  func.func @transform_2(%arg0: i32) -> (i32, i32) {
    %c0_i32 = arith.constant 0 : i32
    %c0_i32_0 = arith.constant 0 : i32
    %c0_i32_1 = arith.constant 0 : i32
    return %c0_i32, %c0_i32_0 : i32, i32
  }
  func.func @transform_3(%arg0: i32) -> (i32, i32) {
    %c0_i32 = arith.constant 0 : i32
    %c0_i32_0 = arith.constant 0 : i32
    %c0_i32_1 = arith.constant 0 : i32
    return %c0_i32, %c0_i32_0 : i32, i32
  }
  func.func @transform_4(%arg0: i32) -> (i32, i32) {
    %c0_i32 = arith.constant 0 : i32
    %c0_i32_0 = arith.constant 0 : i32
    %c0_i32_1 = arith.constant 0 : i32
    return %c0_i32, %c0_i32_0 : i32, i32
  }
  func.func @transform_5(%arg0: i32) -> (i32, i32) {
    %c0_i32 = arith.constant 0 : i32
    %c0_i32_0 = arith.constant 0 : i32
    %c0_i32_1 = arith.constant 0 : i32
    return %c0_i32, %c0_i32_0 : i32, i32
  }
  func.func @transform_6(%arg0: i32) -> (i32, i32) {
    %c0_i32 = arith.constant 0 : i32
    %c0_i32_0 = arith.constant 0 : i32
    %c0_i32_1 = arith.constant 0 : i32
    return %c0_i32, %c0_i32_0 : i32, i32
  }
  func.func @transform_7(%arg0: i32) -> (i32, i32) {
    %c0_i32 = arith.constant 0 : i32
    %c0_i32_0 = arith.constant 0 : i32
    %c0_i32_1 = arith.constant 0 : i32
    return %c0_i32, %c0_i32_0 : i32, i32
  }
  func.func @transform_8(%arg0: i32) -> (i32, i32) {
    %c0_i32 = arith.constant 0 : i32
    %c0_i32_0 = arith.constant 0 : i32
    %c0_i32_1 = arith.constant 0 : i32
    return %c0_i32, %c0_i32_0 : i32, i32
  }
  func.func @transform_9(%arg0: i32) -> (i32, i32) {
    %c0_i32 = arith.constant 0 : i32
    %c0_i32_0 = arith.constant 0 : i32
    return %arg0, %c0_i32 : i32, i32
  }
}

</mosaic_0001>

<llo_original>
// kernel: tpu_custom_call.1
$region0: #{tpu_custom_call.1}
  #allocation0 [shape = 'u32[]', space=smem, size = 0x4, offset = 0x4, fixed_abs, tag = 'smem constant byte address 0x4 - core index']
  #allocation1 [shape = 'u32[144,128]{1,0:T(1,128)}', space=vmem, size = 0x12000, scoped, tag = 'internal scratch']
  #allocation2 [shape = 'f32[1,1]{1,0:T(1,128)S(1)}', space=vmem, size = 0x200, scoped, tag = 'scoped memory for tpu_custom_call.1']
  %s0 = inlined_call_operand.vmem [shape: bf16[256,32], index: 0, kind: input, shape index: {}]
  %s1 = inlined_call_operand.vmem [shape: bf16[32,64], index: 1, kind: input, shape index: {}]
  %s2 = inlined_call_operand.vmem [shape: f32[1,64], index: 2, kind: input, shape index: {}]
  %s3 = inlined_call_operand.vmem [shape: bf16[64,32], index: 3, kind: input, shape index: {}]
  %s4 = inlined_call_operand.vmem [shape: f32[1,32], index: 4, kind: input, shape index: {}]
  %s5 = inlined_call_operand.vmem [shape: bf16[32,16], index: 5, kind: input, shape index: {}]
  %s6 = inlined_call_operand.vmem [shape: f32[1,16], index: 6, kind: input, shape index: {}]
  %s7 = inlined_call_operand.vmem [shape: bf16[16,1], index: 7, kind: input, shape index: {}]
  %s8 = inlined_call_operand.<no memory space> [shape: f32[1,1], index: 8, kind: input, shape index: {}]
  %s9 = inlined_call_operand.vmem [shape: f32[256,1], index: 9, kind: output, shape index: {}]
  %s10 = sld [smem:[#allocation0]]
  $region69: #{tpu_custom_call.1} parent=0
    _
  %s12 = ssub.s32 1, %s10
  %s13 = scalar_select 0, %s12, %s10
  %v14 = vstv %s8
  %15 = vst [vmem:[#allocation2] sm:$0x1] %v14
  loop: start=0, step=1, limit=4
  $region2: #{tpu_custom_call.1} parent=0 // loop_pre_header
    _
  $region3: #{tpu_custom_call.1} parent=0 // loop_header
    %s17 = sphi 0, %s21
    %p18 = scmp.ge.s32.totalorder %s17, 4
    %s27 = sphi 0, %s29
    %s30 = sphi 0, %s27
    %s31 = sphi 0, %s30
    %s47 = sphi 0, %s31
    %s51 = sphi 0, %s51
    %s53 = sphi 0, %s51
    %s54 = sphi 0, %s53
    %s68 = sphi 0, %s54
    %s72 = sphi 0, %s72
    %s74 = sphi 0, %s72
    %s75 = sphi 0, %s74
    %s89 = sphi 0, %s75
    %s93 = sphi 0, %s93
    %s95 = sphi 0, %s93
    %s96 = sphi 0, %s95
    %s110 = sphi 0, %s96
    %s114 = sphi 0, %s114
    %s116 = sphi 0, %s114
    %s117 = sphi 0, %s116
    %s131 = sphi 0, %s117
    %s135 = sphi 0, %s135
    %s137 = sphi 0, %s135
    %s138 = sphi 0, %s137
    %s152 = sphi 0, %s138
    %s156 = sphi 0, %s156
    %s158 = sphi 0, %s156
    %s159 = sphi 0, %s158
    %s173 = sphi 0, %s159
    %s177 = sphi 0, %s177
    %s179 = sphi 0, %s177
    %s180 = sphi 0, %s179
    %s194 = sphi 0, %s180
    %s198 = sphi 0, %s198
    %s200 = sphi 0, %s198
    %s201 = sphi 0, %s200
    %s215 = sphi 0, %s201
    %s221 = sphi 0, %s223
    %s224 = sphi 0, %s221
    %s225 = sphi 0, %s224
    %s241 = sphi 0, %s225
  $region4: #{tpu_custom_call.1} parent=0 // loop_header_branch
    %20 = sbr.rel (%p18) target = $region8
  $region5: #{tpu_custom_call.1} parent=0 // loop_body
    %s22 = ssub.s32 %s17, 1
    %s23 = ssub.s32 %s17, 2
    %s24 = sadd.s32 %s17, 1
    %s25 = ssub.s32 %s17, %s24
    %p26 = scmp.eq.s32.totalorder %s25, 0
    %s28 = sadd.s32 %s27, 1
    %s29 = scalar_select %p26, %s27, %s28
    %p32 = pneg %p26
    %p33 = scmp.eq.s32.totalorder %s17, 1
    %p34 = por %p32, %p33
    %p35 = scmp.ne.s32.totalorder %s27, %s30
    %p36 = scmp.eq.s32.totalorder %s17, 0
    %p37 = por %p35, %p36
    %p38 = scmp.ne.s32.totalorder %s27, %s30
    %p39 = scmp.eq.s32.totalorder %s22, 1
    %p40 = por %p38, %p39
    %p41 = scmp.ne.s32.totalorder %s30, %s31
    %p42 = scmp.eq.s32.totalorder %s22, 0
    %p43 = por %p41, %p42
    %p44 = scmp.ne.s32.totalorder %s30, %s31
    %p45 = scmp.eq.s32.totalorder %s23, 1
    %p46 = por %p44, %p45
    %p48 = scmp.ne.s32.totalorder %s31, %s47
    %p49 = scmp.eq.s32.totalorder %s23, 0
    %p50 = por %p48, %p49
    %s52 = sadd.s32 %s51, 1
    %p55 = scmp.eq.s32.totalorder %s17, 1
    %p56 = scmp.ne.s32.totalorder %s51, %s53
    %p57 = scmp.eq.s32.totalorder %s17, 0
    %p58 = por %p56, %p57
    %p59 = scmp.ne.s32.totalorder %s51, %s53
    %p60 = scmp.eq.s32.totalorder %s22, 1
    %p61 = por %p59, %p60
    %p62 = scmp.ne.s32.totalorder %s53, %s54
    %p63 = scmp.eq.s32.totalorder %s22, 0
    %p64 = por %p62, %p63
    %p65 = scmp.ne.s32.totalorder %s53, %s54
    %p66 = scmp.eq.s32.totalorder %s23, 1
    %p67 = por %p65, %p66
    %p69 = scmp.ne.s32.totalorder %s54, %s68
    %p70 = scmp.eq.s32.totalorder %s23, 0
    %p71 = por %p69, %p70
    %s73 = sadd.s32 %s72, 1
    %p76 = scmp.eq.s32.totalorder %s17, 1
    %p77 = scmp.ne.s32.totalorder %s72, %s74
    %p78 = scmp.eq.s32.totalorder %s17, 0
    %p79 = por %p77, %p78
    %p80 = scmp.ne.s32.totalorder %s72, %s74
    %p81 = scmp.eq.s32.totalorder %s22, 1
    %p82 = por %p80, %p81
    %p83 = scmp.ne.s32.totalorder %s74, %s75
    %p84 = scmp.eq.s32.totalorder %s22, 0
    %p85 = por %p83, %p84
    %p86 = scmp.ne.s32.totalorder %s74, %s75
    %p87 = scmp.eq.s32.totalorder %s23, 1
    %p88 = por %p86, %p87
    %p90 = scmp.ne.s32.totalorder %s75, %s89
    %p91 = scmp.eq.s32.totalorder %s23, 0
    %p92 = por %p90, %p91
    %s94 = sadd.s32 %s93, 1
    %p97 = scmp.eq.s32.totalorder %s17, 1
    %p98 = scmp.ne.s32.totalorder %s93, %s95
    %p99 = scmp.eq.s32.totalorder %s17, 0
    %p100 = por %p98, %p99
    %p101 = scmp.ne.s32.totalorder %s93, %s95
    %p102 = scmp.eq.s32.totalorder %s22, 1
    %p103 = por %p101, %p102
    %p104 = scmp.ne.s32.totalorder %s95, %s96
    %p105 = scmp.eq.s32.totalorder %s22, 0
    %p106 = por %p104, %p105
    %p107 = scmp.ne.s32.totalorder %s95, %s96
    %p108 = scmp.eq.s32.totalorder %s23, 1
    %p109 = por %p107, %p108
    %p111 = scmp.ne.s32.totalorder %s96, %s110
    %p112 = scmp.eq.s32.totalorder %s23, 0
    %p113 = por %p111, %p112
    %s115 = sadd.s32 %s114, 1
    %p118 = scmp.eq.s32.totalorder %s17, 1
    %p119 = scmp.ne.s32.totalorder %s114, %s116
    %p120 = scmp.eq.s32.totalorder %s17, 0
    %p121 = por %p119, %p120
    %p122 = scmp.ne.s32.totalorder %s114, %s116
    %p123 = scmp.eq.s32.totalorder %s22, 1
    %p124 = por %p122, %p123
    %p125 = scmp.ne.s32.totalorder %s116, %s117
    %p126 = scmp.eq.s32.totalorder %s22, 0
    %p127 = por %p125, %p126
    %p128 = scmp.ne.s32.totalorder %s116, %s117
    %p129 = scmp.eq.s32.totalorder %s23, 1
    %p130 = por %p128, %p129
    %p132 = scmp.ne.s32.totalorder %s117, %s131
    %p133 = scmp.eq.s32.totalorder %s23, 0
    %p134 = por %p132, %p133
    %s136 = sadd.s32 %s135, 1
    %p139 = scmp.eq.s32.totalorder %s17, 1
    %p140 = scmp.ne.s32.totalorder %s135, %s137
    %p141 = scmp.eq.s32.totalorder %s17, 0
    %p142 = por %p140, %p141
    %p143 = scmp.ne.s32.totalorder %s135, %s137
    %p144 = scmp.eq.s32.totalorder %s22, 1
    %p145 = por %p143, %p144
    %p146 = scmp.ne.s32.totalorder %s137, %s138
    %p147 = scmp.eq.s32.totalorder %s22, 0
    %p148 = por %p146, %p147
    %p149 = scmp.ne.s32.totalorder %s137, %s138
    %p150 = scmp.eq.s32.totalorder %s23, 1
    %p151 = por %p149, %p150
    %p153 = scmp.ne.s32.totalorder %s138, %s152
    %p154 = scmp.eq.s32.totalorder %s23, 0
    %p155 = por %p153, %p154
    %s157 = sadd.s32 %s156, 1
    %p160 = scmp.eq.s32.totalorder %s17, 1
    %p161 = scmp.ne.s32.totalorder %s156, %s158
    %p162 = scmp.eq.s32.totalorder %s17, 0
    %p163 = por %p161, %p162
    %p164 = scmp.ne.s32.totalorder %s156, %s158
    %p165 = scmp.eq.s32.totalorder %s22, 1
    %p166 = por %p164, %p165
    %p167 = scmp.ne.s32.totalorder %s158, %s159
    %p168 = scmp.eq.s32.totalorder %s22, 0
    %p169 = por %p167, %p168
    %p170 = scmp.ne.s32.totalorder %s158, %s159
    %p171 = scmp.eq.s32.totalorder %s23, 1
    %p172 = por %p170, %p171
    %p174 = scmp.ne.s32.totalorder %s159, %s173
    %p175 = scmp.eq.s32.totalorder %s23, 0
    %p176 = por %p174, %p175
    %s178 = sadd.s32 %s177, 1
    %p181 = scmp.eq.s32.totalorder %s17, 1
    %p182 = scmp.ne.s32.totalorder %s177, %s179
    %p183 = scmp.eq.s32.totalorder %s17, 0
    %p184 = por %p182, %p183
    %p185 = scmp.ne.s32.totalorder %s177, %s179
    %p186 = scmp.eq.s32.totalorder %s22, 1
    %p187 = por %p185, %p186
    %p188 = scmp.ne.s32.totalorder %s179, %s180
    %p189 = scmp.eq.s32.totalorder %s22, 0
    %p190 = por %p188, %p189
    %p191 = scmp.ne.s32.totalorder %s179, %s180
    %p192 = scmp.eq.s32.totalorder %s23, 1
    %p193 = por %p191, %p192
    %p195 = scmp.ne.s32.totalorder %s180, %s194
    %p196 = scmp.eq.s32.totalorder %s23, 0
    %p197 = por %p195, %p196
    %s199 = sadd.s32 %s198, 1
    %p202 = scmp.eq.s32.totalorder %s17, 1
    %p203 = scmp.ne.s32.totalorder %s198, %s200
    %p204 = scmp.eq.s32.totalorder %s17, 0
    %p205 = por %p203, %p204
    %p206 = scmp.ne.s32.totalorder %s198, %s200
    %p207 = scmp.eq.s32.totalorder %s22, 1
    %p208 = por %p206, %p207
    %p209 = scmp.ne.s32.totalorder %s200, %s201
    %p210 = scmp.eq.s32.totalorder %s22, 0
    %p211 = por %p209, %p210
    %p212 = scmp.ne.s32.totalorder %s200, %s201
    %p213 = scmp.eq.s32.totalorder %s23, 1
    %p214 = por %p212, %p213
    %p216 = scmp.ne.s32.totalorder %s201, %s215
    %p217 = scmp.eq.s32.totalorder %s23, 0
    %p218 = por %p216, %p217
    %s219 = ssub.s32 %s17, %s24
    %p220 = scmp.eq.s32.totalorder %s219, 0
    %s222 = sadd.s32 %s221, 1
    %s223 = scalar_select %p220, %s221, %s222
    %p226 = pneg %p220
    %p227 = scmp.eq.s32.totalorder %s17, 1
    %p228 = por %p226, %p227
    %p229 = scmp.ne.s32.totalorder %s221, %s224
    %p230 = scmp.eq.s32.totalorder %s17, 0
    %p231 = por %p229, %p230
    %p232 = scmp.ne.s32.totalorder %s221, %s224
    %p233 = scmp.eq.s32.totalorder %s22, 1
    %p234 = por %p232, %p233
    %p235 = scmp.ne.s32.totalorder %s224, %s225
    %p236 = scmp.eq.s32.totalorder %s22, 0
    %p237 = por %p235, %p236
    %p238 = scmp.ne.s32.totalorder %s224, %s225
    %p239 = scmp.eq.s32.totalorder %s23, 1
    %p240 = por %p238, %p239
    %p242 = scmp.ne.s32.totalorder %s225, %s241
    %p243 = scmp.eq.s32.totalorder %s23, 0
    %p244 = por %p242, %p243
    %p245 = scmp.le.s32.totalorder 1, %s17
    %p246 = scmp.lt.s32.totalorder %s17, 3
    %p247 = pnand %p245, %p246
    %p248 = pneg %p247
    // Predicated region
    $region9: #{tpu_custom_call.1} parent=5 // pred_check
      _
    $region10: #{tpu_custom_call.1} parent=5 // pred_check_branch
      %250 = sbr.rel (%p247) target = $region12
    $region11: #{tpu_custom_call.1} parent=5 // pred_region
      %s251 = ssub.s32 %s17, 1
      // Predicated region
      $region13: #{tpu_custom_call.1} parent=11 // pred_check
        %p252 = pneg %p64
      $region14: #{tpu_custom_call.1} parent=11 // pred_check_branch
        %254 = sbr.rel (%p252) target = $region16
      $region15: #{tpu_custom_call.1} parent=11 // pred_region
        _
      $region16: #{tpu_custom_call.1} parent=11 // pred_fallthru
        _
      // Predicated region
      $region17: #{tpu_custom_call.1} parent=11 // pred_check
        %p255 = pneg %p85
      $region18: #{tpu_custom_call.1} parent=11 // pred_check_branch
        %257 = sbr.rel (%p255) target = $region20
      $region19: #{tpu_custom_call.1} parent=11 // pred_region
        _
      $region20: #{tpu_custom_call.1} parent=11 // pred_fallthru
        _
      // Predicated region
      $region21: #{tpu_custom_call.1} parent=11 // pred_check
        %p258 = pneg %p106
      $region22: #{tpu_custom_call.1} parent=11 // pred_check_branch
        %260 = sbr.rel (%p258) target = $region24
      $region23: #{tpu_custom_call.1} parent=11 // pred_region
        _
      $region24: #{tpu_custom_call.1} parent=11 // pred_fallthru
        _
      // Predicated region
      $region25: #{tpu_custom_call.1} parent=11 // pred_check
        %p261 = pneg %p127
      $region26: #{tpu_custom_call.1} parent=11 // pred_check_branch
        %263 = sbr.rel (%p261) target = $region28
      $region27: #{tpu_custom_call.1} parent=11 // pred_region
        _
      $region28: #{tpu_custom_call.1} parent=11 // pred_fallthru
        _
      // Predicated region
      $region29: #{tpu_custom_call.1} parent=11 // pred_check
        %p264 = pneg %p148
      $region30: #{tpu_custom_call.1} parent=11 // pred_check_branch
        %266 = sbr.rel (%p264) target = $region32
      $region31: #{tpu_custom_call.1} parent=11 // pred_region
        _
      $region32: #{tpu_custom_call.1} parent=11 // pred_fallthru
        _
      // Predicated region
      $region33: #{tpu_custom_call.1} parent=11 // pred_check
        %p267 = pneg %p169
      $region34: #{tpu_custom_call.1} parent=11 // pred_check_branch
        %269 = sbr.rel (%p267) target = $region36
      $region35: #{tpu_custom_call.1} parent=11 // pred_region
        _
      $region36: #{tpu_custom_call.1} parent=11 // pred_fallthru
        _
      // Predicated region
      $region37: #{tpu_custom_call.1} parent=11 // pred_check
        %p270 = pneg %p190
      $region38: #{tpu_custom_call.1} parent=11 // pred_check_branch
        %272 = sbr.rel (%p270) target = $region40
      $region39: #{tpu_custom_call.1} parent=11 // pred_region
        _
      $region40: #{tpu_custom_call.1} parent=11 // pred_fallthru
        _
      // Predicated region
      $region41: #{tpu_custom_call.1} parent=11 // pred_check
        %p273 = pneg %p211
      $region42: #{tpu_custom_call.1} parent=11 // pred_check_branch
        %275 = sbr.rel (%p273) target = $region44
      $region43: #{tpu_custom_call.1} parent=11 // pred_region
        _
      $region44: #{tpu_custom_call.1} parent=11 // pred_fallthru
        _
    $region12: #{tpu_custom_call.1} parent=5 // pred_fallthru
      _
    %p276 = scmp.lt.s32.totalorder %s17, 2
    // Predicated region
    $region45: #{tpu_custom_call.1} parent=5 // pred_check
      %p277 = pneg %p276
    $region46: #{tpu_custom_call.1} parent=5 // pred_check_branch
      %279 = sbr.rel (%p277) target = $region48
    $region47: #{tpu_custom_call.1} parent=5 // pred_region
      // Predicated region
      $region49: #{tpu_custom_call.1} parent=47 // pred_check
        %p280 = pneg %p37
      $region50: #{tpu_custom_call.1} parent=47 // pred_check_branch
        %282 = sbr.rel (%p280) target = $region52
      $region51: #{tpu_custom_call.1} parent=47 // pred_region
        %s283 = smul.u32 16, %s17
        %p284 = scmp.lt.s32.totalorder %s283, 31
        %s285 = scalar_select %p284, %s283, 31
        %s286 = smul.addr %s285, 4
        %s287 = scalar_lea.vmem %s0, %s286
        %s288 = smul.u32 16, %s17
      $region52: #{tpu_custom_call.1} parent=47 // pred_fallthru
        _
    $region48: #{tpu_custom_call.1} parent=5 // pred_fallthru
      _
    %p289 = scmp.le.s32.totalorder 1, %s17
    %p290 = scmp.lt.s32.totalorder %s17, 3
    %p291 = pnand %p289, %p290
    %p292 = pneg %p291
    // Predicated region
    $region53: #{tpu_custom_call.1} parent=5 // pred_check
      _
    $region54: #{tpu_custom_call.1} parent=5 // pred_check_branch
      %294 = sbr.rel (%p291) target = $region56
    $region55: #{tpu_custom_call.1} parent=5 // pred_region
      %s295 = ssub.s32 %s17, 1
      %s296 = smul.u32 16, %s22
      %p297 = scmp.lt.s32.totalorder %s296, 31
      %s298 = scalar_select %p297, %s296, 31
      %s299 = smul.addr %s298, 4
      %s300 = scalar_lea.vmem %s0, %s299
      %p301 = pneg %p43
      %p302 = pneg %p40
      %p303 = pneg %p64
      %p304 = pneg %p61
      %p305 = pneg %p85
      %p306 = pneg %p82
      %p307 = pneg %p106
      %p308 = pneg %p103
      %p309 = pneg %p127
      %p310 = pneg %p124
      %p311 = pneg %p148
      %p312 = pneg %p145
      %p313 = pneg %p169
      %p314 = pneg %p166
      %p315 = pneg %p190
      %p316 = pneg %p187
      %p317 = pneg %p211
      %p318 = pneg %p208
      %p319 = pneg %p237
      %p320 = pneg %p234
      %s321 = smul.u32 16, %s22
      %p322 = scmp.lt.s32.totalorder %s321, 31
      %s323 = scalar_select %p322, %s321, 31
      %s324 = smul.addr %s323, 8
      %s325 = scalar_lea.vmem %s9, %s324
      %s326 = smul.u32 16, %s22
      %p327 = scmp.lt.s32.totalorder %s326, 31
      %s328 = scalar_select %p327, %s326, 31
      %s329 = smul.addr %s328, 4
      %s330 = scalar_lea.vmem %s0, %s329
      %s331 = smul.u32 16, %s22
      %s332 = smul.u32 16, %s22
      %p333 = scmp.lt.s32.totalorder %s332, 31
      %s334 = scalar_select %p333, %s332, 31
      %s335 = smul.addr %s334, 8
      %s336 = scalar_lea.vmem %s9, %s335
      %s337 = smul.u32 16, %s22
      %v339 = vld [vmem:[%s330] sm:$0xf]
      %v340 = vld [vmem:[%s330 + $0x4] sm:$0xf]
      %v341 = vld [vmem:[%s330 + $0x8] sm:$0xf]
      %v342 = vld [vmem:[%s330 + $0xc] sm:$0xf]
      %v343 = vld [vmem:[%s330 + $0x10] sm:$0xf]
      %v344 = vld [vmem:[%s330 + $0x14] sm:$0xf]
      %v345 = vld [vmem:[%s330 + $0x18] sm:$0xf]
      %v346 = vld [vmem:[%s330 + $0x1c] sm:$0xf]
      %v347 = vld [vmem:[%s330 + $0x20] sm:$0xf]
      %v348 = vld [vmem:[%s330 + $0x24] sm:$0xf]
      %v349 = vld [vmem:[%s330 + $0x28] sm:$0xf]
      %v350 = vld [vmem:[%s330 + $0x2c] sm:$0xf]
      %v351 = vld [vmem:[%s330 + $0x30] sm:$0xf]
      %v352 = vld [vmem:[%s330 + $0x34] sm:$0xf]
      %v353 = vld [vmem:[%s330 + $0x38] sm:$0xf]
      %v354 = vld [vmem:[%s330 + $0x3c] sm:$0xf]
      %v355 = vld [vmem:[%s1] sm:$0xf]
      %v356 = vld [vmem:[%s1 + $0x4] sm:$0xf]
      %v357 = vld [vmem:[%s1 + $0x8] sm:$0xf]
      %v358 = vld [vmem:[%s1 + $0xc] sm:$0xf]
      %v359 = vld [vmem:[%s2] sm:$0x1]
      %v361 = vlaneseq
      %v362 = vshrl.u32 %v361, 7
      %v363 = vsub.s32 0, %v362
      %v364 = vrot.slane %v359, %v363
      %v382 = vunpack.c.l.b16 %v339
      %v383 = vunpack.c.l.b16 %v340
      %v384 = vunpack.c.l.b16 %v341
      %v385 = vunpack.c.l.b16 %v342
      %v386 = vunpack.c.l.b16 %v343
      %v387 = vunpack.c.l.b16 %v344
      %v388 = vunpack.c.l.b16 %v345
      %v389 = vunpack.c.l.b16 %v346
      %v390 = vunpack.c.l.b16 %v347
      %v391 = vunpack.c.l.b16 %v348
      %v392 = vunpack.c.l.b16 %v349
      %v393 = vunpack.c.l.b16 %v350
      %v394 = vunpack.c.l.b16 %v351
      %v395 = vunpack.c.l.b16 %v352
      %v396 = vunpack.c.l.b16 %v353
      %v397 = vunpack.c.l.b16 %v354
      %v398 = vpack.c.b16 %v383, %v382
      %v399 = vpack.c.b16 %v385, %v384
      %v400 = vpack.c.b16 %v387, %v386
      %v401 = vpack.c.b16 %v389, %v388
      %v402 = vpack.c.b16 %v391, %v390
      %v403 = vpack.c.b16 %v393, %v392
      %v404 = vpack.c.b16 %v395, %v394
      %v405 = vpack.c.b16 %v397, %v396
      %v410 = vunpack.c.l.b16 %v355
      %v411 = vunpack.c.l.b16 %v356
      %v412 = vunpack.c.l.b16 %v357
      %v413 = vunpack.c.l.b16 %v358
      %v414 = vpack.c.b16 %v411, %v410
      %v415 = vpack.c.b16 %v413, %v412
      %vm418 = vcmask 261120
      %v420 = vsel %vm418, %v398, 0
      %v423 = vsel %vm418, %v399, 0
      %v426 = vsel %vm418, %v400, 0
      %v429 = vsel %vm418, %v401, 0
      %v432 = vsel %vm418, %v402, 0
      %v435 = vsel %vm418, %v403, 0
      %v438 = vsel %vm418, %v404, 0
      %v441 = vsel %vm418, %v405, 0
      %443 = vmatprep.subr.bf16.mxu0 0
      %444 = vmatpush1.bf16.msra.mxu0 %v414
      %445 = vmatprep.subr.bf16.mxu0 0
      %446 = vmatpush1.bf16.msra.mxu0 %v415
      %447 = vmatprep.subr.bf16.mxu0 0
      %448 = vmatpush1.bf16.msra.mxu0 0
      %449 = vmatprep.subr.bf16.mxu0 0
      %450 = vmatpush1.bf16.msra.mxu0 0
      %451 = vmatprep.subr.bf16.mxu0 0
      %452 = vmatpush1.bf16.msra.mxu0 0
      %453 = vmatprep.subr.bf16.mxu0 0
      %454 = vmatpush1.bf16.msra.mxu0 0
      %455 = vmatprep.subr.bf16.mxu0 0
      %456 = vmatpush1.bf16.msra.mxu0 0
      %457 = vmatprep.subr.bf16.mxu0 0
      %458 = vmatpush1.bf16.msra.mxu0 0
      %459 = vmatprep.subr.bf16.mxu0 0
      %460 = vmatpush1.bf16.msra.mxu0 0
      %461 = vmatprep.subr.bf16.mxu0 0
      %462 = vmatpush1.bf16.msra.mxu0 0
      %463 = vmatprep.subr.bf16.mxu0 0
      %464 = vmatpush1.bf16.msra.mxu0 0
      %465 = vmatprep.subr.bf16.mxu0 0
      %466 = vmatpush1.bf16.msra.mxu0 0
      %467 = vmatprep.subr.bf16.mxu0 0
      %468 = vmatpush1.bf16.msra.mxu0 0
      %469 = vmatprep.subr.bf16.mxu0 0
      %470 = vmatpush1.bf16.msra.mxu0 0
      %471 = vmatprep.subr.bf16.mxu0 0
      %472 = vmatpush1.bf16.msra.mxu0 0
      %473 = vmatprep.subr.bf16.mxu0 0
      %474 = vmatpush1.bf16.msra.mxu0 0
      %475 = vmatprep.mubr.bf16.mxu0 0
      %476 = vmatmul.mubr.bf16.gmra.mrb[0].mxu0 %v420
      %v477 = vpop.f32.mrb[0].mxu0
      %v478 = vadd.f32 %v364, %v477
      %v479 = vpop.f32.mrb[0].mxu0
      %v480 = vpop.f32.mrb[0].mxu0
      %v481 = vadd.f32 %v364, %v480
      %v482 = vpop.f32.mrb[0].mxu0
      %483 = vmatprep.mubr.bf16.mxu0 0
      %484 = vmatmul.mubr.bf16.gmra.mrb[0].mxu0 %v423
      %v485 = vpop.f32.mrb[0].mxu0
      %v486 = vadd.f32 %v364, %v485
      %v487 = vpop.f32.mrb[0].mxu0
      %v488 = vpop.f32.mrb[0].mxu0
      %v489 = vadd.f32 %v364, %v488
      %v490 = vpop.f32.mrb[0].mxu0
      %491 = vmatprep.mubr.bf16.mxu0 0
      %492 = vmatmul.mubr.bf16.gmra.mrb[0].mxu0 %v426
      %v493 = vpop.f32.mrb[0].mxu0
      %v494 = vadd.f32 %v364, %v493
      %v495 = vpop.f32.mrb[0].mxu0
      %v496 = vpop.f32.mrb[0].mxu0
      %v497 = vadd.f32 %v364, %v496
      %v498 = vpop.f32.mrb[0].mxu0
      %499 = vmatprep.mubr.bf16.mxu0 0
      %500 = vmatmul.mubr.bf16.gmra.mrb[0].mxu0 %v429
      %v501 = vpop.f32.mrb[0].mxu0
      %v502 = vadd.f32 %v364, %v501
      %v503 = vpop.f32.mrb[0].mxu0
      %v504 = vpop.f32.mrb[0].mxu0
      %v505 = vadd.f32 %v364, %v504
      %v506 = vpop.f32.mrb[0].mxu0
      %507 = vmatprep.mubr.bf16.mxu0 0
      %508 = vmatmul.mubr.bf16.gmra.mrb[0].mxu0 %v432
      %v509 = vpop.f32.mrb[0].mxu0
      %v510 = vadd.f32 %v364, %v509
      %v511 = vpop.f32.mrb[0].mxu0
      %v512 = vpop.f32.mrb[0].mxu0
      %v513 = vadd.f32 %v364, %v512
      %v514 = vpop.f32.mrb[0].mxu0
      %515 = vmatprep.mubr.bf16.mxu0 0
      %516 = vmatmul.mubr.bf16.gmra.mrb[0].mxu0 %v435
      %v517 = vpop.f32.mrb[0].mxu0
      %v518 = vadd.f32 %v364, %v517
      %v519 = vpop.f32.mrb[0].mxu0
      %v520 = vpop.f32.mrb[0].mxu0
      %v521 = vadd.f32 %v364, %v520
      %v522 = vpop.f32.mrb[0].mxu0
      %523 = vmatprep.mubr.bf16.mxu0 0
      %524 = vmatmul.mubr.bf16.gmra.mrb[0].mxu0 %v438
      %v525 = vpop.f32.mrb[0].mxu0
      %v526 = vadd.f32 %v364, %v525
      %v527 = vpop.f32.mrb[0].mxu0
      %v528 = vpop.f32.mrb[0].mxu0
      %v529 = vadd.f32 %v364, %v528
      %v530 = vpop.f32.mrb[0].mxu0
      %531 = vmatprep.mubr.bf16.mxu0 0
      %532 = vmatmul.mubr.bf16.gmra.mrb[0].mxu0 %v441
      %v533 = vpop.f32.mrb[0].mxu0
      %v534 = vadd.f32 %v364, %v533
      %v535 = vpop.f32.mrb[0].mxu0
      %v536 = vpop.f32.mrb[0].mxu0
      %v537 = vadd.f32 %v364, %v536
      %v538 = vpop.f32.mrb[0].mxu0
      %539 = vdwg.mxu0
      %v540 = vmax.f32 %v478, 0.0
      %v541 = vmax.f32 %v481, 0.0
      %v542 = vmax.f32 %v486, 0.0
      %v543 = vmax.f32 %v489, 0.0
      %v544 = vmax.f32 %v494, 0.0
      %v545 = vmax.f32 %v497, 0.0
      %v546 = vmax.f32 %v502, 0.0
      %v547 = vmax.f32 %v505, 0.0
      %v548 = vmax.f32 %v510, 0.0
      %v549 = vmax.f32 %v513, 0.0
      %v550 = vmax.f32 %v518, 0.0
      %v551 = vmax.f32 %v521, 0.0
      %v552 = vmax.f32 %v526, 0.0
      %v553 = vmax.f32 %v529, 0.0
      %v554 = vmax.f32 %v534, 0.0
      %v555 = vmax.f32 %v537, 0.0
      %v556 = vpack.c.bf16 %v541, %v540
      %v557 = vpack.c.bf16 %v543, %v542
      %v558 = vpack.c.bf16 %v545, %v544
      %v559 = vpack.c.bf16 %v547, %v546
      %v560 = vpack.c.bf16 %v549, %v548
      %v561 = vpack.c.bf16 %v551, %v550
      %v562 = vpack.c.bf16 %v553, %v552
      %v563 = vpack.c.bf16 %v555, %v554
      %v564 = vld [vmem:[%s3] sm:$0xf]
      %v565 = vld [vmem:[%s3 + $0x4] sm:$0xf]
      %v566 = vld [vmem:[%s3 + $0x8] sm:$0xf]
      %v567 = vld [vmem:[%s3 + $0xc] sm:$0xf]
      %v568 = vld [vmem:[%s3 + $0x10] sm:$0xf]
      %v569 = vld [vmem:[%s3 + $0x14] sm:$0xf]
      %v570 = vld [vmem:[%s3 + $0x18] sm:$0xf]
      %v571 = vld [vmem:[%s3 + $0x1c] sm:$0xf]
      %v572 = vld [vmem:[%s4] sm:$0x1]
      %v574 = vlaneseq
      %v575 = vshrl.u32 %v574, 7
      %v576 = vsub.s32 0, %v575
      %v577 = vrot.slane %v572, %v576
      %v587 = vunpack.c.l.b16 %v564
      %v588 = vunpack.c.l.b16 %v565
      %v589 = vunpack.c.l.b16 %v566
      %v590 = vunpack.c.l.b16 %v567
      %v591 = vunpack.c.l.b16 %v568
      %v592 = vunpack.c.l.b16 %v569
      %v593 = vunpack.c.l.b16 %v570
      %v594 = vunpack.c.l.b16 %v571
      %v595 = vpack.c.b16 %v588, %v587
      %v596 = vpack.c.b16 %v590, %v589
      %v597 = vpack.c.b16 %v592, %v591
      %v598 = vpack.c.b16 %v594, %v593
      %vm603 = vcmask 523264
      %v605 = vsel %vm603, %v556, 0
      %v608 = vsel %vm603, %v557, 0
      %v611 = vsel %vm603, %v558, 0
      %v614 = vsel %vm603, %v559, 0
      %v617 = vsel %vm603, %v560, 0
      %v620 = vsel %vm603, %v561, 0
      %v623 = vsel %vm603, %v562, 0
      %v626 = vsel %vm603, %v563, 0
      %628 = vmatprep.subr.bf16.mxu0 0
      %629 = vmatpush1.bf16.msra.mxu0 %v595
      %630 = vmatprep.subr.bf16.mxu0 0
      %631 = vmatpush1.bf16.msra.mxu0 %v596
      %632 = vmatprep.subr.bf16.mxu0 0
      %633 = vmatpush1.bf16.msra.mxu0 %v597
      %634 = vmatprep.subr.bf16.mxu0 0
      %635 = vmatpush1.bf16.msra.mxu0 %v598
      %636 = vmatprep.subr.bf16.mxu0 0
      %637 = vmatpush1.bf16.msra.mxu0 0
      %638 = vmatprep.subr.bf16.mxu0 0
      %639 = vmatpush1.bf16.msra.mxu0 0
      %640 = vmatprep.subr.bf16.mxu0 0
      %641 = vmatpush1.bf16.msra.mxu0 0
      %642 = vmatprep.subr.bf16.mxu0 0
      %643 = vmatpush1.bf16.msra.mxu0 0
      %644 = vmatprep.subr.bf16.mxu0 0
      %645 = vmatpush1.bf16.msra.mxu0 0
      %646 = vmatprep.subr.bf16.mxu0 0
      %647 = vmatpush1.bf16.msra.mxu0 0
      %648 = vmatprep.subr.bf16.mxu0 0
      %649 = vmatpush1.bf16.msra.mxu0 0
      %650 = vmatprep.subr.bf16.mxu0 0
      %651 = vmatpush1.bf16.msra.mxu0 0
      %652 = vmatprep.subr.bf16.mxu0 0
      %653 = vmatpush1.bf16.msra.mxu0 0
      %654 = vmatprep.subr.bf16.mxu0 0
      %655 = vmatpush1.bf16.msra.mxu0 0
      %656 = vmatprep.subr.bf16.mxu0 0
      %657 = vmatpush1.bf16.msra.mxu0 0
      %658 = vmatprep.subr.bf16.mxu0 0
      %659 = vmatpush1.bf16.msra.mxu0 0
      %660 = vmatprep.mubr.bf16.mxu0 0
      %661 = vmatmul.mubr.bf16.gmra.mrb[0].mxu0 %v605
      %v662 = vpop.f32.mrb[0].mxu0
      %v663 = vadd.f32 %v577, %v662
      %v664 = vpop.f32.mrb[0].mxu0
      %v665 = vpop.f32.mrb[0].mxu0
      %v666 = vadd.f32 %v577, %v665
      %v667 = vpop.f32.mrb[0].mxu0
      %668 = vmatprep.mubr.bf16.mxu0 0
      %669 = vmatmul.mubr.bf16.gmra.mrb[0].mxu0 %v608
      %v670 = vpop.f32.mrb[0].mxu0
      %v671 = vadd.f32 %v577, %v670
      %v672 = vpop.f32.mrb[0].mxu0
      %v673 = vpop.f32.mrb[0].mxu0
      %v674 = vadd.f32 %v577, %v673
      %v675 = vpop.f32.mrb[0].mxu0
      %676 = vmatprep.mubr.bf16.mxu0 0
      %677 = vmatmul.mubr.bf16.gmra.mrb[0].mxu0 %v611
      %v678 = vpop.f32.mrb[0].mxu0
      %v679 = vadd.f32 %v577, %v678
      %v680 = vpop.f32.mrb[0].mxu0
      %v681 = vpop.f32.mrb[0].mxu0
      %v682 = vadd.f32 %v577, %v681
      %v683 = vpop.f32.mrb[0].mxu0
      %684 = vmatprep.mubr.bf16.mxu0 0
      %685 = vmatmul.mubr.bf16.gmra.mrb[0].mxu0 %v614
      %v686 = vpop.f32.mrb[0].mxu0
      %v687 = vadd.f32 %v577, %v686
      %v688 = vpop.f32.mrb[0].mxu0
      %v689 = vpop.f32.mrb[0].mxu0
      %v690 = vadd.f32 %v577, %v689
      %v691 = vpop.f32.mrb[0].mxu0
      %692 = vmatprep.mubr.bf16.mxu0 0
      %693 = vmatmul.mubr.bf16.gmra.mrb[0].mxu0 %v617
      %v694 = vpop.f32.mrb[0].mxu0
      %v695 = vadd.f32 %v577, %v694
      %v696 = vpop.f32.mrb[0].mxu0
      %v697 = vpop.f32.mrb[0].mxu0
      %v698 = vadd.f32 %v577, %v697
      %v699 = vpop.f32.mrb[0].mxu0
      %700 = vmatprep.mubr.bf16.mxu0 0
      %701 = vmatmul.mubr.bf16.gmra.mrb[0].mxu0 %v620
      %v702 = vpop.f32.mrb[0].mxu0
      %v703 = vadd.f32 %v577, %v702
      %v704 = vpop.f32.mrb[0].mxu0
      %v705 = vpop.f32.mrb[0].mxu0
      %v706 = vadd.f32 %v577, %v705
      %v707 = vpop.f32.mrb[0].mxu0
      %708 = vmatprep.mubr.bf16.mxu0 0
      %709 = vmatmul.mubr.bf16.gmra.mrb[0].mxu0 %v623
      %v710 = vpop.f32.mrb[0].mxu0
      %v711 = vadd.f32 %v577, %v710
      %v712 = vpop.f32.mrb[0].mxu0
      %v713 = vpop.f32.mrb[0].mxu0
      %v714 = vadd.f32 %v577, %v713
      %v715 = vpop.f32.mrb[0].mxu0
      %716 = vmatprep.mubr.bf16.mxu0 0
      %717 = vmatmul.mubr.bf16.gmra.mrb[0].mxu0 %v626
      %v718 = vpop.f32.mrb[0].mxu0
      %v719 = vadd.f32 %v577, %v718
      %v720 = vpop.f32.mrb[0].mxu0
      %v721 = vpop.f32.mrb[0].mxu0
      %v722 = vadd.f32 %v577, %v721
      %v723 = vpop.f32.mrb[0].mxu0
      %724 = vdwg.mxu0
      %v725 = vmax.f32 %v663, 0.0
      %v726 = vmax.f32 %v666, 0.0
      %v727 = vmax.f32 %v671, 0.0
      %v728 = vmax.f32 %v674, 0.0
      %v729 = vmax.f32 %v679, 0.0
      %v730 = vmax.f32 %v682, 0.0
      %v731 = vmax.f32 %v687, 0.0
      %v732 = vmax.f32 %v690, 0.0
      %v733 = vmax.f32 %v695, 0.0
      %v734 = vmax.f32 %v698, 0.0
      %v735 = vmax.f32 %v703, 0.0
      %v736 = vmax.f32 %v706, 0.0
      %v737 = vmax.f32 %v711, 0.0
      %v738 = vmax.f32 %v714, 0.0
      %v739 = vmax.f32 %v719, 0.0
      %v740 = vmax.f32 %v722, 0.0
      %v741 = vpack.c.bf16 %v726, %v725
      %v742 = vpack.c.bf16 %v728, %v727
      %v743 = vpack.c.bf16 %v730, %v729
      %v744 = vpack.c.bf16 %v732, %v731
      %v745 = vpack.c.bf16 %v734, %v733
      %v746 = vpack.c.bf16 %v736, %v735
      %v747 = vpack.c.bf16 %v738, %v737
      %v748 = vpack.c.bf16 %v740, %v739
      %v749 = vld [vmem:[%s5] sm:$0xf]
      %v750 = vld [vmem:[%s5 + $0x4] sm:$0xf]
      %v751 = vld [vmem:[%s5 + $0x8] sm:$0xf]
      %v752 = vld [vmem:[%s5 + $0xc] sm:$0xf]
      %v753 = vld [vmem:[%s6] sm:$0x1]
      %v755 = vlaneseq
      %v756 = vshrl.u32 %v755, 7
      %v757 = vsub.s32 0, %v756
      %v758 = vrot.slane %v753, %v757
      %v764 = vunpack.c.l.b16 %v749
      %v765 = vunpack.c.l.b16 %v750
      %v766 = vunpack.c.l.b16 %v751
      %v767 = vunpack.c.l.b16 %v752
      %v768 = vpack.c.b16 %v765, %v764
      %v769 = vpack.c.b16 %v767, %v766
      %v773 = vsel %vm418, %v741, 0
      %v776 = vsel %vm418, %v742, 0
      %v779 = vsel %vm418, %v743, 0
      %v782 = vsel %vm418, %v744, 0
      %v785 = vsel %vm418, %v745, 0
      %v788 = vsel %vm418, %v746, 0
      %v791 = vsel %vm418, %v747, 0
      %v794 = vsel %vm418, %v748, 0
      %796 = vmatprep.subr.bf16.mxu0 0
      %797 = vmatpush1.bf16.msra.mxu0 %v768
      %798 = vmatprep.subr.bf16.mxu0 0
      %799 = vmatpush1.bf16.msra.mxu0 %v769
      %800 = vmatprep.subr.bf16.mxu0 0
      %801 = vmatpush1.bf16.msra.mxu0 0
      %802 = vmatprep.subr.bf16.mxu0 0
      %803 = vmatpush1.bf16.msra.mxu0 0
      %804 = vmatprep.subr.bf16.mxu0 0
      %805 = vmatpush1.bf16.msra.mxu0 0
      %806 = vmatprep.subr.bf16.mxu0 0
      %807 = vmatpush1.bf16.msra.mxu0 0
      %808 = vmatprep.subr.bf16.mxu0 0
      %809 = vmatpush1.bf16.msra.mxu0 0
      %810 = vmatprep.subr.bf16.mxu0 0
      %811 = vmatpush1.bf16.msra.mxu0 0
      %812 = vmatprep.subr.bf16.mxu0 0
      %813 = vmatpush1.bf16.msra.mxu0 0
      %814 = vmatprep.subr.bf16.mxu0 0
      %815 = vmatpush1.bf16.msra.mxu0 0
      %816 = vmatprep.subr.bf16.mxu0 0
      %817 = vmatpush1.bf16.msra.mxu0 0
      %818 = vmatprep.subr.bf16.mxu0 0
      %819 = vmatpush1.bf16.msra.mxu0 0
      %820 = vmatprep.subr.bf16.mxu0 0
      %821 = vmatpush1.bf16.msra.mxu0 0
      %822 = vmatprep.subr.bf16.mxu0 0
      %823 = vmatpush1.bf16.msra.mxu0 0
      %824 = vmatprep.subr.bf16.mxu0 0
      %825 = vmatpush1.bf16.msra.mxu0 0
      %826 = vmatprep.subr.bf16.mxu0 0
      %827 = vmatpush1.bf16.msra.mxu0 0
      %828 = vmatprep.mubr.bf16.mxu0 0
      %829 = vmatmul.mubr.bf16.gmra.mrb[0].mxu0 %v773
      %v830 = vpop.f32.mrb[0].mxu0
      %v831 = vadd.f32 %v758, %v830
      %v832 = vpop.f32.mrb[0].mxu0
      %v833 = vpop.f32.mrb[0].mxu0
      %v834 = vadd.f32 %v758, %v833
      %v835 = vpop.f32.mrb[0].mxu0
      %836 = vmatprep.mubr.bf16.mxu0 0
      %837 = vmatmul.mubr.bf16.gmra.mrb[0].mxu0 %v776
      %v838 = vpop.f32.mrb[0].mxu0
      %v839 = vadd.f32 %v758, %v838
      %v840 = vpop.f32.mrb[0].mxu0
      %v841 = vpop.f32.mrb[0].mxu0
      %v842 = vadd.f32 %v758, %v841
      %v843 = vpop.f32.mrb[0].mxu0
      %844 = vmatprep.mubr.bf16.mxu0 0
      %845 = vmatmul.mubr.bf16.gmra.mrb[0].mxu0 %v779
      %v846 = vpop.f32.mrb[0].mxu0
      %v847 = vadd.f32 %v758, %v846
      %v848 = vpop.f32.mrb[0].mxu0
      %v849 = vpop.f32.mrb[0].mxu0
      %v850 = vadd.f32 %v758, %v849
      %v851 = vpop.f32.mrb[0].mxu0
      %852 = vmatprep.mubr.bf16.mxu0 0
      %853 = vmatmul.mubr.bf16.gmra.mrb[0].mxu0 %v782
      %v854 = vpop.f32.mrb[0].mxu0
      %v855 = vadd.f32 %v758, %v854
      %v856 = vpop.f32.mrb[0].mxu0
      %v857 = vpop.f32.mrb[0].mxu0
      %v858 = vadd.f32 %v758, %v857
      %v859 = vpop.f32.mrb[0].mxu0
      %860 = vmatprep.mubr.bf16.mxu0 0
      %861 = vmatmul.mubr.bf16.gmra.mrb[0].mxu0 %v785
      %v862 = vpop.f32.mrb[0].mxu0
      %v863 = vadd.f32 %v758, %v862
      %v864 = vpop.f32.mrb[0].mxu0
      %v865 = vpop.f32.mrb[0].mxu0
      %v866 = vadd.f32 %v758, %v865
      %v867 = vpop.f32.mrb[0].mxu0
      %868 = vmatprep.mubr.bf16.mxu0 0
      %869 = vmatmul.mubr.bf16.gmra.mrb[0].mxu0 %v788
      %v870 = vpop.f32.mrb[0].mxu0
      %v871 = vadd.f32 %v758, %v870
      %v872 = vpop.f32.mrb[0].mxu0
      %v873 = vpop.f32.mrb[0].mxu0
      %v874 = vadd.f32 %v758, %v873
      %v875 = vpop.f32.mrb[0].mxu0
      %876 = vmatprep.mubr.bf16.mxu0 0
      %877 = vmatmul.mubr.bf16.gmra.mrb[0].mxu0 %v791
      %v878 = vpop.f32.mrb[0].mxu0
      %v879 = vadd.f32 %v758, %v878
      %v880 = vpop.f32.mrb[0].mxu0
      %v881 = vpop.f32.mrb[0].mxu0
      %v882 = vadd.f32 %v758, %v881
      %v883 = vpop.f32.mrb[0].mxu0
      %884 = vmatprep.mubr.bf16.mxu0 0
      %885 = vmatmul.mubr.bf16.gmra.mrb[0].mxu0 %v794
      %v886 = vpop.f32.mrb[0].mxu0
      %v887 = vadd.f32 %v758, %v886
      %v888 = vpop.f32.mrb[0].mxu0
      %v889 = vpop.f32.mrb[0].mxu0
      %v890 = vadd.f32 %v758, %v889
      %v891 = vpop.f32.mrb[0].mxu0
      %892 = vdwg.mxu0
      %v893 = vmax.f32 %v831, 0.0
      %v894 = vmax.f32 %v834, 0.0
      %v895 = vmax.f32 %v839, 0.0
      %v896 = vmax.f32 %v842, 0.0
      %v897 = vmax.f32 %v847, 0.0
      %v898 = vmax.f32 %v850, 0.0
      %v899 = vmax.f32 %v855, 0.0
      %v900 = vmax.f32 %v858, 0.0
      %v901 = vmax.f32 %v863, 0.0
      %v902 = vmax.f32 %v866, 0.0
      %v903 = vmax.f32 %v871, 0.0
      %v904 = vmax.f32 %v874, 0.0
      %v905 = vmax.f32 %v879, 0.0
      %v906 = vmax.f32 %v882, 0.0
      %v907 = vmax.f32 %v887, 0.0
      %v908 = vmax.f32 %v890, 0.0
      %v909 = vpack.c.bf16 %v894, %v893
      %v910 = vpack.c.bf16 %v896, %v895
      %v911 = vpack.c.bf16 %v898, %v897
      %v912 = vpack.c.bf16 %v900, %v899
      %v913 = vpack.c.bf16 %v902, %v901
      %v914 = vpack.c.bf16 %v904, %v903
      %v915 = vpack.c.bf16 %v906, %v905
      %v916 = vpack.c.bf16 %v908, %v907
      %v917 = vld [vmem:[%s7] sm:$0xf]
      %v918 = vld [vmem:[%s7 + $0x4] sm:$0xf]
      %v919 = vld [vmem:[#allocation2] sm:$0x1]
      %v921 = vlaneseq
      %v922 = vshrl.u32 %v921, 7
      %v923 = vsub.s32 0, %v922
      %v924 = vrot.slane %v919, %v923
      %v928 = vunpack.c.l.b16 %v917
      %v929 = vunpack.c.l.b16 %v918
      %v930 = vpack.c.b16 %v929, %v928
      %vm932 = vcmask 130048
      %v934 = vsel %vm932, %v909, 0
      %v937 = vsel %vm932, %v910, 0
      %v940 = vsel %vm932, %v911, 0
      %v943 = vsel %vm932, %v912, 0
      %v946 = vsel %vm932, %v913, 0
      %v949 = vsel %vm932, %v914, 0
      %v952 = vsel %vm932, %v915, 0
      %v955 = vsel %vm932, %v916, 0
      %957 = vmatprep.subr.bf16.mxu0 0
      %958 = vmatpush1.bf16.msra.mxu0 %v930
      %959 = vmatprep.subr.bf16.mxu0 0
      %960 = vmatpush1.bf16.msra.mxu0 0
      %961 = vmatprep.subr.bf16.mxu0 0
      %962 = vmatpush1.bf16.msra.mxu0 0
      %963 = vmatprep.subr.bf16.mxu0 0
      %964 = vmatpush1.bf16.msra.mxu0 0
      %965 = vmatprep.subr.bf16.mxu0 0
      %966 = vmatpush1.bf16.msra.mxu0 0
      %967 = vmatprep.subr.bf16.mxu0 0
      %968 = vmatpush1.bf16.msra.mxu0 0
      %969 = vmatprep.subr.bf16.mxu0 0
      %970 = vmatpush1.bf16.msra.mxu0 0
      %971 = vmatprep.subr.bf16.mxu0 0
      %972 = vmatpush1.bf16.msra.mxu0 0
      %973 = vmatprep.subr.bf16.mxu0 0
      %974 = vmatpush1.bf16.msra.mxu0 0
      %975 = vmatprep.subr.bf16.mxu0 0
      %976 = vmatpush1.bf16.msra.mxu0 0
      %977 = vmatprep.subr.bf16.mxu0 0
      %978 = vmatpush1.bf16.msra.mxu0 0
      %979 = vmatprep.subr.bf16.mxu0 0
      %980 = vmatpush1.bf16.msra.mxu0 0
      %981 = vmatprep.subr.bf16.mxu0 0
      %982 = vmatpush1.bf16.msra.mxu0 0
      %983 = vmatprep.subr.bf16.mxu0 0
      %984 = vmatpush1.bf16.msra.mxu0 0
      %985 = vmatprep.subr.bf16.mxu0 0
      %986 = vmatpush1.bf16.msra.mxu0 0
      %987 = vmatprep.subr.bf16.mxu0 0
      %988 = vmatpush1.bf16.msra.mxu0 0
      %989 = vmatprep.mubr.bf16.mxu0 0
      %990 = vmatmul.mubr.bf16.gmra.mrb[0].mxu0 %v934
      %v991 = vpop.f32.mrb[0].mxu0
      %v992 = vadd.f32 %v924, %v991
      %v993 = vpop.f32.mrb[0].mxu0
      %v994 = vpop.f32.mrb[0].mxu0
      %v995 = vadd.f32 %v924, %v994
      %v996 = vpop.f32.mrb[0].mxu0
      %997 = vmatprep.mubr.bf16.mxu0 0
      %998 = vmatmul.mubr.bf16.gmra.mrb[0].mxu0 %v937
      %v999 = vpop.f32.mrb[0].mxu0
      %v1000 = vadd.f32 %v924, %v999
      %v1001 = vpop.f32.mrb[0].mxu0
      %v1002 = vpop.f32.mrb[0].mxu0
      %v1003 = vadd.f32 %v924, %v1002
      %v1004 = vpop.f32.mrb[0].mxu0
      %1005 = vmatprep.mubr.bf16.mxu0 0
      %1006 = vmatmul.mubr.bf16.gmra.mrb[0].mxu0 %v940
      %v1007 = vpop.f32.mrb[0].mxu0
      %v1008 = vadd.f32 %v924, %v1007
      %v1009 = vpop.f32.mrb[0].mxu0
      %v1010 = vpop.f32.mrb[0].mxu0
      %v1011 = vadd.f32 %v924, %v1010
      %v1012 = vpop.f32.mrb[0].mxu0
      %1013 = vmatprep.mubr.bf16.mxu0 0
      %1014 = vmatmul.mubr.bf16.gmra.mrb[0].mxu0 %v943
      %v1015 = vpop.f32.mrb[0].mxu0
      %v1016 = vadd.f32 %v924, %v1015
      %v1017 = vpop.f32.mrb[0].mxu0
      %v1018 = vpop.f32.mrb[0].mxu0
      %v1019 = vadd.f32 %v924, %v1018
      %v1020 = vpop.f32.mrb[0].mxu0
      %1021 = vmatprep.mubr.bf16.mxu0 0
      %1022 = vmatmul.mubr.bf16.gmra.mrb[0].mxu0 %v946
      %v1023 = vpop.f32.mrb[0].mxu0
      %v1024 = vadd.f32 %v924, %v1023
      %v1025 = vpop.f32.mrb[0].mxu0
      %v1026 = vpop.f32.mrb[0].mxu0
      %v1027 = vadd.f32 %v924, %v1026
      %v1028 = vpop.f32.mrb[0].mxu0
      %1029 = vmatprep.mubr.bf16.mxu0 0
      %1030 = vmatmul.mubr.bf16.gmra.mrb[0].mxu0 %v949
      %v1031 = vpop.f32.mrb[0].mxu0
      %v1032 = vadd.f32 %v924, %v1031
      %v1033 = vpop.f32.mrb[0].mxu0
      %v1034 = vpop.f32.mrb[0].mxu0
      %v1035 = vadd.f32 %v924, %v1034
      %v1036 = vpop.f32.mrb[0].mxu0
      %1037 = vmatprep.mubr.bf16.mxu0 0
      %1038 = vmatmul.mubr.bf16.gmra.mrb[0].mxu0 %v952
      %v1039 = vpop.f32.mrb[0].mxu0
      %v1040 = vadd.f32 %v924, %v1039
      %v1041 = vpop.f32.mrb[0].mxu0
      %v1042 = vpop.f32.mrb[0].mxu0
      %v1043 = vadd.f32 %v924, %v1042
      %v1044 = vpop.f32.mrb[0].mxu0
      %1045 = vmatprep.mubr.bf16.mxu0 0
      %1046 = vmatmul.mubr.bf16.gmra.mrb[0].mxu0 %v955
      %v1047 = vpop.f32.mrb[0].mxu0
      %v1048 = vadd.f32 %v924, %v1047
      %v1049 = vpop.f32.mrb[0].mxu0
      %v1050 = vpop.f32.mrb[0].mxu0
      %v1051 = vadd.f32 %v924, %v1050
      %v1052 = vpop.f32.mrb[0].mxu0
      %1053 = vdwg.mxu0
      %vm1054 = vcmask 7168
      %1055 = vst.msk [vmem:[%s336] sm:$0xff] %vm1054, %v992
      %1056 = vst.msk [vmem:[%s336 + $0x8] sm:$0xff] %vm1054, %v995
      %1057 = vst.msk [vmem:[%s336 + $0x10] sm:$0xff] %vm1054, %v1000
      %1058 = vst.msk [vmem:[%s336 + $0x18] sm:$0xff] %vm1054, %v1003
      %1059 = vst.msk [vmem:[%s336 + $0x20] sm:$0xff] %vm1054, %v1008
      %1060 = vst.msk [vmem:[%s336 + $0x28] sm:$0xff] %vm1054, %v1011
      %1061 = vst.msk [vmem:[%s336 + $0x30] sm:$0xff] %vm1054, %v1016
      %1062 = vst.msk [vmem:[%s336 + $0x38] sm:$0xff] %vm1054, %v1019
      %1063 = vst.msk [vmem:[%s336 + $0x40] sm:$0xff] %vm1054, %v1024
      %1064 = vst.msk [vmem:[%s336 + $0x48] sm:$0xff] %vm1054, %v1027
      %1065 = vst.msk [vmem:[%s336 + $0x50] sm:$0xff] %vm1054, %v1032
      %1066 = vst.msk [vmem:[%s336 + $0x58] sm:$0xff] %vm1054, %v1035
      %1067 = vst.msk [vmem:[%s336 + $0x60] sm:$0xff] %vm1054, %v1040
      %1068 = vst.msk [vmem:[%s336 + $0x68] sm:$0xff] %vm1054, %v1043
      %1069 = vst.msk [vmem:[%s336 + $0x70] sm:$0xff] %vm1054, %v1048
      %1070 = vst.msk [vmem:[%s336 + $0x78] sm:$0xff] %vm1054, %v1051
      %s1071 = smul.u32 16, %s22
      %p1072 = scmp.lt.s32.totalorder %s1071, 31
      %s1073 = scalar_select %p1072, %s1071, 31
      %s1074 = smul.addr %s1073, 8
      %s1075 = scalar_lea.vmem %s9, %s1074
      // Predicated region
      $region57: #{tpu_custom_call.1} parent=55 // pred_check
        %p1076 = pneg %p234
      $region58: #{tpu_custom_call.1} parent=55 // pred_check_branch
        %1078 = sbr.rel (%p1076) target = $region60
      $region59: #{tpu_custom_call.1} parent=55 // pred_region
        %s1079 = smul.u32 16, %s22
      $region60: #{tpu_custom_call.1} parent=55 // pred_fallthru
        _
    $region56: #{tpu_custom_call.1} parent=5 // pred_fallthru
      _
    %p1080 = scmp.le.s32.totalorder 2, %s17
    // Predicated region
    $region61: #{tpu_custom_call.1} parent=5 // pred_check
      %p1081 = pneg %p1080
    $region62: #{tpu_custom_call.1} parent=5 // pred_check_branch
      %1083 = sbr.rel (%p1081) target = $region64
    $region63: #{tpu_custom_call.1} parent=5 // pred_region
      %s1084 = ssub.s32 %s17, 2
      // Predicated region
      $region65: #{tpu_custom_call.1} parent=63 // pred_check
        %p1085 = pneg %p240
      $region66: #{tpu_custom_call.1} parent=63 // pred_check_branch
        %1087 = sbr.rel (%p1085) target = $region68
      $region67: #{tpu_custom_call.1} parent=63 // pred_region
        %s1088 = smul.u32 16, %s23
        %p1089 = scmp.lt.s32.totalorder %s1088, 31
        %s1090 = scalar_select %p1089, %s1088, 31
        %s1091 = smul.addr %s1090, 8
        %s1092 = scalar_lea.vmem %s9, %s1091
      $region68: #{tpu_custom_call.1} parent=63 // pred_fallthru
        _
    $region64: #{tpu_custom_call.1} parent=5 // pred_fallthru
      _
  $region6: #{tpu_custom_call.1} parent=0 // loop_footer
    %s21 = sadd.s32 1, %s17
  $region7: #{tpu_custom_call.1} parent=0 // loop_footer_branch
    %16 = sbr.rel target = $region3
  $region8: #{tpu_custom_call.1} parent=0 // loop_exit
    _

</llo_original>
